<compile_context>
chip_gen: v6e
topology: v6e:2x2x1
jax: 0.10.0
libtpu: 0.0.40
codegen_flags: <defaults>
</compile_context>

<pallas_src>
import functools

import jax
import jax.numpy as jnp
from jax.experimental import pallas as pl
from jax.experimental.pallas import tpu as pltpu

LANE = 128  # TPU lane width; hidden/action dims are zero-padded to this in the slabs.


def _round_up(x, m):
    return (x + m - 1) // m * m


# --------------------------------------------------------------------------- kernel
def qnetwork_kernel(x_ref, w_ref, b_ref, o_ref, *, state_size, action_size):
    """One batch tile: (TB, S) activations x three packed layers, all VMEM resident."""
    cdtype = w_ref.dtype                      # f32 (default) or bf16 MXU operand dtype
    x = x_ref[...].astype(cdtype)             # (TB, S) — unpadded activations

    # Static slices of the packed slabs are free (no data movement).
    w1 = w_ref[0:state_size, :]               # (S, 128): only the live rows of fc1
    w2 = w_ref[1 * LANE:2 * LANE, :]          # (128, 128)
    w3 = w_ref[2 * LANE:3 * LANE, :]          # (128, 128)
    b_all = b_ref[...]                        # (8, 128) f32; rows 0..2 = b1, b2, b3
    b1 = b_all[0:1, :]
    b2 = b_all[1:2, :]
    b3 = b_all[2:3, :]

    # fc1 + ReLU (f32 accumulate / bias / ReLU)
    h1 = jnp.maximum(jnp.dot(x, w1, preferred_element_type=jnp.float32) + b1, 0.0)
    # fc2 + ReLU
    h2 = jnp.maximum(
        jnp.dot(h1.astype(cdtype), w2, preferred_element_type=jnp.float32) + b2, 0.0)
    # fc3 (no activation)
    o = jnp.dot(h2.astype(cdtype), w3, preferred_element_type=jnp.float32) + b3
    # Narrow (masked) store: only the live action lanes go back to HBM.
    o_ref[...] = o[:, :action_size].astype(o_ref.dtype)


# --------------------------------------------------------------------- param packing
def init_params(key, state_size, action_size, hidden_size=64):
    """Deterministic init mimicking nn.Linear's U(-1/sqrt(fan_in), 1/sqrt(fan_in))."""
    ks = jax.random.split(key, 6)

    def linear(kw, kb, fan_in, fan_out):
        bound = 1.0 / jnp.sqrt(jnp.float32(fan_in))
        w = jax.random.uniform(kw, (fan_in, fan_out), jnp.float32, -bound, bound)
        b = jax.random.uniform(kb, (1, fan_out), jnp.float32, -bound, bound)
        return w, b

    w1, b1 = linear(ks[0], ks[1], state_size, hidden_size)
    w2, b2 = linear(ks[2], ks[3], hidden_size, hidden_size)
    w3, b3 = linear(ks[4], ks[5], hidden_size, action_size)
    return (w1, b1, w2, b2, w3, b3)


def pack_params(params, compute_dtype=jnp.float32):
    """Zero-pad every layer to 128 lanes and pack into 2 slabs (once, not per call)."""
    w1, b1, w2, b2, w3, b3 = params

    def pad_w(w):
        out = jnp.zeros((LANE, LANE), jnp.float32)
        return out.at[: w.shape[0], : w.shape[1]].set(w)

    def pad_b(b):
        out = jnp.zeros((1, LANE), jnp.float32)
        return out.at[:, : b.shape[1]].set(b)

    w_slab = jnp.concatenate([pad_w(w1), pad_w(w2), pad_w(w3)], axis=0)  # (384, 128)
    w_slab = w_slab.astype(compute_dtype)
    b_slab = jnp.concatenate(
        [pad_b(b1), pad_b(b2), pad_b(b3), jnp.zeros((5, LANE), jnp.float32)], axis=0
    )                                                                    # (8, 128) f32
    return w_slab, b_slab


# --------------------------------------------------------------------------- wrapper
def _pick_block_b(batch):
    bp8 = _round_up(batch, 8)
    block_b = min(4096, bp8)                      # big tile: amortize per-step overhead
    # v7x: with a large batch keep >=2 grid steps so both TensorCores get work.
    if bp8 >= 1024 and bp8 // block_b < 2:
        block_b = _round_up(pl.cdiv(bp8, 2), 8)
    return block_b


@functools.partial(jax.jit, static_argnames=("action_size", "block_b"))
def qnetwork_forward(state, w_slab, b_slab, *, action_size, block_b=None):
    B, S = state.shape
    assert S <= LANE and w_slab.shape == (3 * LANE, LANE) and b_slab.shape == (8, LANE)

    if block_b is None:
        block_b = _pick_block_b(B)
    block_b = _round_up(block_b, 8)
    Bp = _round_up(B, block_b)

    x = state                                     # no lane padding: (B, S) straight to VMEM
    if Bp != B:
        x = jnp.pad(x, ((0, Bp - B), (0, 0)))     # only sublane (batch) padding

    flops = 2 * Bp * (S + 2 * LANE) * LANE
    bytes_accessed = (
        Bp * S * x.dtype.itemsize                 # state in
        + Bp * action_size * 4                    # q-values out
        + w_slab.size * w_slab.dtype.itemsize
        + b_slab.size * b_slab.dtype.itemsize
    )

    kernel = functools.partial(qnetwork_kernel, state_size=S, action_size=action_size)

    out = pl.pallas_call(
        kernel,
        out_shape=jax.ShapeDtypeStruct((Bp, action_size), jnp.float32),
        grid=(Bp // block_b,),
        in_specs=[
            pl.BlockSpec((block_b, S), lambda i: (i, 0)),   # state: tiled on batch only
            pl.BlockSpec(w_slab.shape, lambda i: (0, 0)),   # weights: VMEM-resident
            pl.BlockSpec(b_slab.shape, lambda i: (0, 0)),   # biases:  VMEM-resident
        ],
        out_specs=pl.BlockSpec((block_b, action_size), lambda i: (i, 0)),
        compiler_params=pltpu.CompilerParams(
            dimension_semantics=("parallel",),              # shard batch across TCs (v7x)
        ),
        cost_estimate=pl.CostEstimate(
            flops=flops, transcendentals=0, bytes_accessed=bytes_accessed
        ),
    )(x, w_slab, b_slab)

    return out[:B, :]                                       # drop batch padding only


# ------------------------------------------------------------------------------ main
if __name__ == "__main__":
    # Small shapes consistent with the module: batch=8 states of dim 8,
    # hidden=64 (module default), 4 actions.
    state_size, action_size, hidden_size = 8, 4, 64
    batch = 8

    key = jax.random.PRNGKey(0)
    k_params, k_state = jax.random.split(key)
    params = init_params(k_params, state_size, action_size, hidden_size)
    state = jax.random.normal(k_state, (batch, state_size), dtype=jnp.float32)

    packed = pack_params(params)                            # f32 weights (module parity)
    q_values = qnetwork_forward(state, *packed, action_size=action_size)
    q_values = jax.block_until_ready(q_values)

    # Plain-JAX f32 reference (F.relu(fc1) -> F.relu(fc2) -> fc3).
    w1, b1, w2, b2, w3, b3 = params
    h1 = jnp.maximum(jnp.dot(state, w1) + b1, 0.0)
    h2 = jnp.maximum(jnp.dot(h1, w2) + b2, 0.0)
    ref = jnp.dot(h2, w3) + b3

    assert q_values.shape == (batch, action_size)
    # Loose-ish tolerance: MXU f32 matmuls may use a different pass count than XLA's dot.
    max_err = float(jnp.max(jnp.abs(q_values - ref)))
    assert jnp.allclose(q_values, ref, atol=2e-2, rtol=2e-2), max_err

    print("KERNEL_OK")
</pallas_src>

<mosaic_0001>
module attributes {stable_mosaic.version = 11 : i64} {
  func.func @qnetwork_kernel(%arg0: i32, %arg1: memref<8x8xf32, #tpu.memory_space<vmem>>, %arg2: memref<384x128xf32, #tpu.memory_space<vmem>>, %arg3: memref<8x128xf32, #tpu.memory_space<vmem>>, %arg4: memref<8x4xf32, #tpu.memory_space<vmem>>) attributes {dimension_semantics = [#tpu.dimension_semantics<parallel>], iteration_bounds = array<i64: 1>, scalar_prefetch = 0 : i64, scratch_operands = 0 : i64, tpu.core_type = #tpu.core_type<tc>, window_params = [{transform_indices = @transform_0, window_bounds = array<i64: 8, 8>}, {pipeline_mode = #tpu.pipeline_mode<synchronous>, transform_indices = @transform_1, window_bounds = array<i64: 384, 128>}, {pipeline_mode = #tpu.pipeline_mode<synchronous>, transform_indices = @transform_2, window_bounds = array<i64: 8, 128>}, {transform_indices = @transform_3, window_bounds = array<i64: 8, 4>}]} {
    %c0 = arith.constant 0 : index
    %c0_0 = arith.constant 0 : index
    %0 = vector.load %arg1[%c0, %c0_0] : memref<8x8xf32, #tpu.memory_space<vmem>>, vector<8x8xf32>
    %c0_1 = arith.constant 0 : index
    %c0_2 = arith.constant 0 : index
    %1 = vector.load %arg2[%c0_1, %c0_2] : memref<384x128xf32, #tpu.memory_space<vmem>>, vector<8x128xf32>
    %c128 = arith.constant 128 : index
    %c0_3 = arith.constant 0 : index
    %2 = vector.load %arg2[%c128, %c0_3] : memref<384x128xf32, #tpu.memory_space<vmem>>, vector<128x128xf32>
    %c256 = arith.constant 256 : index
    %c0_4 = arith.constant 0 : index
    %3 = vector.load %arg2[%c256, %c0_4] : memref<384x128xf32, #tpu.memory_space<vmem>>, vector<128x128xf32>
    %c0_5 = arith.constant 0 : index
    %c0_6 = arith.constant 0 : index
    %4 = vector.load %arg3[%c0_5, %c0_6] : memref<8x128xf32, #tpu.memory_space<vmem>>, vector<8x128xf32>
    %5 = vector.extract_strided_slice %4 {offsets = [0, 0], sizes = [1, 128], strides = [1, 1]} : vector<8x128xf32> to vector<1x128xf32>
    %6 = vector.extract_strided_slice %4 {offsets = [1, 0], sizes = [1, 128], strides = [1, 1]} : vector<8x128xf32> to vector<1x128xf32>
    %7 = vector.extract_strided_slice %4 {offsets = [2, 0], sizes = [1, 128], strides = [1, 1]} : vector<8x128xf32> to vector<1x128xf32>
    %cst = arith.constant dense<0.000000e+00> : vector<8x128xf32>
    %8 = tpu.matmul %0, %1, %cst {dimension_numbers = #tpu.dot_dimension_numbers<[1], [0], [0], [1], [0, 0, 1, 1], [], []>} : vector<8x8xf32>, vector<8x128xf32>, vector<8x128xf32> -> vector<8x128xf32>
    %9 = vector.broadcast %5 : vector<1x128xf32> to vector<8x128xf32>
    %10 = arith.addf %8, %9 : vector<8x128xf32>
    %cst_7 = arith.constant 0.000000e+00 : f32
    %11 = vector.broadcast %cst_7 : f32 to vector<8x128xf32>
    %12 = arith.maximumf %10, %11 : vector<8x128xf32>
    %cst_8 = arith.constant dense<0.000000e+00> : vector<8x128xf32>
    %13 = tpu.matmul %12, %2, %cst_8 {dimension_numbers = #tpu.dot_dimension_numbers<[1], [0], [0], [1], [0, 0, 1, 1], [], []>} : vector<8x128xf32>, vector<128x128xf32>, vector<8x128xf32> -> vector<8x128xf32>
    %14 = vector.broadcast %6 : vector<1x128xf32> to vector<8x128xf32>
    %15 = arith.addf %13, %14 : vector<8x128xf32>
    %cst_9 = arith.constant 0.000000e+00 : f32
    %16 = vector.broadcast %cst_9 : f32 to vector<8x128xf32>
    %17 = arith.maximumf %15, %16 : vector<8x128xf32>
    %cst_10 = arith.constant dense<0.000000e+00> : vector<8x128xf32>
    %18 = tpu.matmul %17, %3, %cst_10 {dimension_numbers = #tpu.dot_dimension_numbers<[1], [0], [0], [1], [0, 0, 1, 1], [], []>} : vector<8x128xf32>, vector<128x128xf32>, vector<8x128xf32> -> vector<8x128xf32>
    %19 = vector.broadcast %7 : vector<1x128xf32> to vector<8x128xf32>
    %20 = arith.addf %18, %19 : vector<8x128xf32>
    %21 = vector.extract_strided_slice %20 {offsets = [0, 0], sizes = [8, 4], strides = [1, 1]} : vector<8x128xf32> to vector<8x4xf32>
    %c0_11 = arith.constant 0 : index
    %c0_12 = arith.constant 0 : index
    %22 = vector.load %arg4[%c0_11, %c0_12] : memref<8x4xf32, #tpu.memory_space<vmem>>, vector<8x4xf32>
    tpu.vector_store %arg4[%c0_11, %c0_12], %21 {strides = array<i32>} : memref<8x4xf32, #tpu.memory_space<vmem>>, vector<8x4xf32>,
    return
  }
  func.func @transform_0(%arg0: i32) -> (i32, i32) {
    %c0_i32 = arith.constant 0 : i32
    %c0_i32_0 = arith.constant 0 : i32
    return %arg0, %c0_i32 : i32, i32
  }
  func.func @transform_1(%arg0: i32) -> (i32, i32) {
    %c0_i32 = arith.constant 0 : i32
    %c0_i32_0 = arith.constant 0 : i32
    %c0_i32_1 = arith.constant 0 : i32
    return %c0_i32, %c0_i32_0 : i32, i32
  }
  func.func @transform_2(%arg0: i32) -> (i32, i32) {
    %c0_i32 = arith.constant 0 : i32
    %c0_i32_0 = arith.constant 0 : i32
    %c0_i32_1 = arith.constant 0 : i32
    return %c0_i32, %c0_i32_0 : i32, i32
  }
  func.func @transform_3(%arg0: i32) -> (i32, i32) {
    %c0_i32 = arith.constant 0 : i32
    %c0_i32_0 = arith.constant 0 : i32
    return %arg0, %c0_i32 : i32, i32
  }
}

</mosaic_0001>

<llo_original>
// kernel: qnetwork_forward.1
$region0: #{qnetwork_forward.1}
  #allocation0 [shape = 'u32[]', space=smem, size = 0x4, offset = 0x4, fixed_abs, tag = 'smem constant byte address 0x4 - core index']
  #allocation1 [shape = 'u32[144,128]{1,0:T(1,128)}', space=vmem, size = 0x12000, scoped, tag = 'internal scratch']
  %s0 = inlined_call_operand.hbm [shape: f32[8,8], index: 0, kind: input, shape index: {}]
  %s1 = inlined_call_operand.hbm [shape: f32[384,128], index: 1, kind: input, shape index: {}]
  %s2 = inlined_call_operand.hbm [shape: f32[8,128], index: 2, kind: input, shape index: {}]
  %s3 = inlined_call_operand.vmem [shape: f32[8,4], index: 3, kind: output, shape index: {}]
  %s4 = sld [smem:[#allocation0]]
  $region34: #{qnetwork_forward.1} parent=0
    _
  %s6 = ssub.s32 1, %s4
  %s7 = scalar_select 0, %s6, %s4
  $region1: #{qnetwork_forward.1} parent=0
    #allocation2 [shape = 'u8[4096]{0}', space=vmem, size = 0x1000, scoped, tag = 'input window, operand 0, single buffered']
    #allocation3 [shape = 's32[1]{0}', space=sflag, size = 0x4, scoped, tag = 'scoped memory for qnetwork_forward.1']
    #allocation4 [shape = 'u8[196608]{0}', space=vmem, size = 0x30000, scoped, tag = 'input window, operand 1, single buffered']
    #allocation5 [shape = 's32[1]{0}', space=sflag, size = 0x4, scoped, tag = 'scoped memory for qnetwork_forward.1']
    #allocation6 [shape = 'u8[4096]{0}', space=vmem, size = 0x1000, scoped, tag = 'input window, operand 2, single buffered']
    %8 = vsyncpa [#allocation3], 0
    %9 = vsyncpa [#allocation5], 0
    // Predicated region
    $region2: #{qnetwork_forward.1} parent=1 // pred_check
      _
    $region3: #{qnetwork_forward.1} parent=1 // pred_check_branch
      %11 = sbr.rel (0) target = $region5
    $region4: #{qnetwork_forward.1} parent=1 // pred_region
      %s13 = ssub.s32 128, 128
      %14 = vsyncadd [#allocation3], %s13
      %s16 = sshll.u32 [#allocation2], 4
      %s17 = int_to_ptr.vmem [resolvable:$true] %s16
      %19 = dma.hbm_to_vmem [thread:$0]  %s0, 128, %s17, [#allocation3]
    $region5: #{qnetwork_forward.1} parent=1 // pred_fallthru
      _
    // Predicated region
    $region6: #{qnetwork_forward.1} parent=1 // pred_check
      _
    $region7: #{qnetwork_forward.1} parent=1 // pred_check_branch
      %21 = sbr.rel (0) target = $region9
    $region8: #{qnetwork_forward.1} parent=1 // pred_region
      %s23 = ssub.s32 6144, 6144
      %24 = vsyncadd [#allocation5], %s23
      %s25 = sshll.u32 [#allocation4], 4
      %s26 = int_to_ptr.vmem [resolvable:$true] %s25
      %31 = dma.hbm_to_vmem [thread:$0]  %s1, 6144, %s26, [#allocation5], 128, 128, 8
    $region9: #{qnetwork_forward.1} parent=1 // pred_fallthru
      _
    // Predicated region
    $region10: #{qnetwork_forward.1} parent=1 // pred_check
      _
    $region11: #{qnetwork_forward.1} parent=1 // pred_check_branch
      %33 = sbr.rel (0) target = $region13
    $region12: #{qnetwork_forward.1} parent=1 // pred_region
      %s35 = ssub.s32 128, 128
      %36 = vsyncadd [#allocation5], %s35
      %s38 = sshll.u32 [#allocation6], 4
      %s39 = int_to_ptr.vmem [resolvable:$true] %s38
      %41 = dma.hbm_to_vmem [thread:$0]  %s2, 128, %s39, [#allocation5]
    $region13: #{qnetwork_forward.1} parent=1 // pred_fallthru
      _
    // Predicated region
    $region14: #{qnetwork_forward.1} parent=1 // pred_check
      _
    $region15: #{qnetwork_forward.1} parent=1 // pred_check_branch
      %43 = sbr.rel (0) target = $region17
    $region16: #{qnetwork_forward.1} parent=1 // pred_region
      %44 = dma.done [#allocation3], 128
    $region17: #{qnetwork_forward.1} parent=1 // pred_fallthru
      _
    // Predicated region
    $region18: #{qnetwork_forward.1} parent=1 // pred_check
      _
    $region19: #{qnetwork_forward.1} parent=1 // pred_check_branch
      %46 = sbr.rel (0) target = $region21
    $region20: #{qnetwork_forward.1} parent=1 // pred_region
      %47 = dma.done [#allocation5], 6144
    $region21: #{qnetwork_forward.1} parent=1 // pred_fallthru
      _
    // Predicated region
    $region22: #{qnetwork_forward.1} parent=1 // pred_check
      _
    $region23: #{qnetwork_forward.1} parent=1 // pred_check_branch
      %49 = sbr.rel (0) target = $region25
    $region24: #{qnetwork_forward.1} parent=1 // pred_region
      %50 = dma.done [#allocation5], 128
    $region25: #{qnetwork_forward.1} parent=1 // pred_fallthru
      _
    %v51 = vld [vmem:[#allocation2] sm:$0xff]
    %v52 = vld [vmem:[#allocation4] sm:$0xff]
    %v53 = vld [vmem:[#allocation4 + $0x80] sm:$0xff]
    %v54 = vld [vmem:[#allocation4 + $0x88] sm:$0xff]
    %v55 = vld [vmem:[#allocation4 + $0x90] sm:$0xff]
    %v56 = vld [vmem:[#allocation4 + $0x98] sm:$0xff]
    %v57 = vld [vmem:[#allocation4 + $0xa0] sm:$0xff]
    %v58 = vld [vmem:[#allocation4 + $0xa8] sm:$0xff]
    %v59 = vld [vmem:[#allocation4 + $0xb0] sm:$0xff]
    %v60 = vld [vmem:[#allocation4 + $0xb8] sm:$0xff]
    %v61 = vld [vmem:[#allocation4 + $0xc0] sm:$0xff]
    %v62 = vld [vmem:[#allocation4 + $0xc8] sm:$0xff]
    %v63 = vld [vmem:[#allocation4 + $0xd0] sm:$0xff]
    %v64 = vld [vmem:[#allocation4 + $0xd8] sm:$0xff]
    %v65 = vld [vmem:[#allocation4 + $0xe0] sm:$0xff]
    %v66 = vld [vmem:[#allocation4 + $0xe8] sm:$0xff]
    %v67 = vld [vmem:[#allocation4 + $0xf0] sm:$0xff]
    %v68 = vld [vmem:[#allocation4 + $0xf8] sm:$0xff]
    %v69 = vld [vmem:[#allocation4 + $0x100] sm:$0xff]
    %v70 = vld [vmem:[#allocation4 + $0x108] sm:$0xff]
    %v71 = vld [vmem:[#allocation4 + $0x110] sm:$0xff]
    %v72 = vld [vmem:[#allocation4 + $0x118] sm:$0xff]
    %v73 = vld [vmem:[#allocation4 + $0x120] sm:$0xff]
    %v74 = vld [vmem:[#allocation4 + $0x128] sm:$0xff]
    %v75 = vld [vmem:[#allocation4 + $0x130] sm:$0xff]
    %v76 = vld [vmem:[#allocation4 + $0x138] sm:$0xff]
    %v77 = vld [vmem:[#allocation4 + $0x140] sm:$0xff]
    %v78 = vld [vmem:[#allocation4 + $0x148] sm:$0xff]
    %v79 = vld [vmem:[#allocation4 + $0x150] sm:$0xff]
    %v80 = vld [vmem:[#allocation4 + $0x158] sm:$0xff]
    %v81 = vld [vmem:[#allocation4 + $0x160] sm:$0xff]
    %v82 = vld [vmem:[#allocation4 + $0x168] sm:$0xff]
    %v83 = vld [vmem:[#allocation4 + $0x170] sm:$0xff]
    %v84 = vld [vmem:[#allocation4 + $0x178] sm:$0xff]
    %v85 = vld [vmem:[#allocation6] sm:$0xff]
    %v86 = vlaneseq
    %v87 = vshrl.u32 %v86, 7
    %v88 = vsub.s32 0, %v87
    %v89 = vrot.slane %v85, %v88
    %vm90 = vcmask 64512
    %v92 = vsel %vm90, %v51, 0
    %94 = vmatprep.subr.mxu0 0.0
    %95 = vmatpush1.msra.mxu0 0.0
    %96 = vmatprep.subr.mxu0 0.0
    %97 = vmatpush1.msra.mxu0 0.0
    %98 = vmatprep.subr.mxu0 0.0
    %99 = vmatpush1.msra.mxu0 0.0
    %100 = vmatprep.subr.mxu0 0.0
    %101 = vmatpush1.msra.mxu0 0.0
    %102 = vmatprep.subr.mxu0 0.0
    %103 = vmatpush1.msra.mxu0 0.0
    %104 = vmatprep.subr.mxu0 0.0
    %105 = vmatpush1.msra.mxu0 0.0
    %106 = vmatprep.subr.mxu0 0.0
    %107 = vmatpush1.msra.mxu0 0.0
    %108 = vmatprep.subr.mxu0 0.0
    %109 = vmatpush1.msra.mxu0 0.0
    %110 = vmatprep.subr.mxu0 0.0
    %111 = vmatpush1.msra.mxu0 0.0
    %112 = vmatprep.subr.mxu0 0.0
    %113 = vmatpush1.msra.mxu0 0.0
    %114 = vmatprep.subr.mxu0 0.0
    %115 = vmatpush1.msra.mxu0 0.0
    %116 = vmatprep.subr.mxu0 0.0
    %117 = vmatpush1.msra.mxu0 0.0
    %118 = vmatprep.subr.mxu0 0.0
    %119 = vmatpush1.msra.mxu0 0.0
    %120 = vmatprep.subr.mxu0 0.0
    %121 = vmatpush1.msra.mxu0 0.0
    %122 = vmatprep.subr.mxu0 0.0
    %123 = vmatpush1.msra.mxu0 0.0
    %124 = vmatprep.subr.mxu0 0.0
    %125 = vmatpush1.msra.mxu0 %v52
    %126 = vmatprep.subr.mxu0 0.0
    %127 = vmatpush2.msra.mxu0 0.0
    %128 = vmatprep.subr.mxu0 0.0
    %129 = vmatpush2.msra.mxu0 0.0
    %130 = vmatprep.subr.mxu0 0.0
    %131 = vmatpush2.msra.mxu0 0.0
    %132 = vmatprep.subr.mxu0 0.0
    %133 = vmatpush2.msra.mxu0 0.0
    %134 = vmatprep.subr.mxu0 0.0
    %135 = vmatpush2.msra.mxu0 0.0
    %136 = vmatprep.subr.mxu0 0.0
    %137 = vmatpush2.msra.mxu0 0.0
    %138 = vmatprep.subr.mxu0 0.0
    %139 = vmatpush2.msra.mxu0 0.0
    %140 = vmatprep.subr.mxu0 0.0
    %141 = vmatpush2.msra.mxu0 0.0
    %142 = vmatprep.subr.mxu0 0.0
    %143 = vmatpush2.msra.mxu0 0.0
    %144 = vmatprep.subr.mxu0 0.0
    %145 = vmatpush2.msra.mxu0 0.0
    %146 = vmatprep.subr.mxu0 0.0
    %147 = vmatpush2.msra.mxu0 0.0
    %148 = vmatprep.subr.mxu0 0.0
    %149 = vmatpush2.msra.mxu0 0.0
    %150 = vmatprep.subr.mxu0 0.0
    %151 = vmatpush2.msra.mxu0 0.0
    %152 = vmatprep.subr.mxu0 0.0
    %153 = vmatpush2.msra.mxu0 0.0
    %154 = vmatprep.subr.mxu0 0.0
    %155 = vmatpush2.msra.mxu0 0.0
    %156 = vmatprep.subr.mxu0 0.0
    %157 = vmatpush2.msra.mxu0 0.0
    %158 = vmatprep.mubr.f32.mxu0 0.0
    %159 = vmatmul.mubr.f32.gmra.mxu0 %v92
    %v160 = vpop.f32.mrf.mxu0
    %v161 = vadd.f32 %v89, %v160
    %v162 = vpop.f32.mrf.mxu0
    %163 = vdwg.mxu0
    %v164 = vmax.f32 %v161, 0.0
    %v165 = vlaneseq
    %v166 = vshrl.u32 %v165, 7
    %v167 = vsub.s32 1, %v166
    %v168 = vrot.slane %v85, %v167
    %169 = vmatprep.subr.mxu0 0.0
    %170 = vmatpush1.msra.mxu0 %v68
    %171 = vmatprep.subr.mxu0 0.0
    %172 = vmatpush1.msra.mxu0 %v67
    %173 = vmatprep.subr.mxu0 0.0
    %174 = vmatpush1.msra.mxu0 %v66
    %175 = vmatprep.subr.mxu0 0.0
    %176 = vmatpush1.msra.mxu0 %v65
    %177 = vmatprep.subr.mxu0 0.0
    %178 = vmatpush1.msra.mxu0 %v64
    %179 = vmatprep.subr.mxu0 0.0
    %180 = vmatpush1.msra.mxu0 %v63
    %181 = vmatprep.subr.mxu0 0.0
    %182 = vmatpush1.msra.mxu0 %v62
    %183 = vmatprep.subr.mxu0 0.0
    %184 = vmatpush1.msra.mxu0 %v61
    %185 = vmatprep.subr.mxu0 0.0
    %186 = vmatpush1.msra.mxu0 %v60
    %187 = vmatprep.subr.mxu0 0.0
    %188 = vmatpush1.msra.mxu0 %v59
    %189 = vmatprep.subr.mxu0 0.0
    %190 = vmatpush1.msra.mxu0 %v58
    %191 = vmatprep.subr.mxu0 0.0
    %192 = vmatpush1.msra.mxu0 %v57
    %193 = vmatprep.subr.mxu0 0.0
    %194 = vmatpush1.msra.mxu0 %v56
    %195 = vmatprep.subr.mxu0 0.0
    %196 = vmatpush1.msra.mxu0 %v55
    %197 = vmatprep.subr.mxu0 0.0
    %198 = vmatpush1.msra.mxu0 %v54
    %199 = vmatprep.subr.mxu0 0.0
    %200 = vmatpush1.msra.mxu0 %v53
    %201 = vmatprep.subr.mxu0 0.0
    %202 = vmatpush2.msra.mxu0 0.0
    %203 = vmatprep.subr.mxu0 0.0
    %204 = vmatpush2.msra.mxu0 0.0
    %205 = vmatprep.subr.mxu0 0.0
    %206 = vmatpush2.msra.mxu0 0.0
    %207 = vmatprep.subr.mxu0 0.0
    %208 = vmatpush2.msra.mxu0 0.0
    %209 = vmatprep.subr.mxu0 0.0
    %210 = vmatpush2.msra.mxu0 0.0
    %211 = vmatprep.subr.mxu0 0.0
    %212 = vmatpush2.msra.mxu0 0.0
    %213 = vmatprep.subr.mxu0 0.0
    %214 = vmatpush2.msra.mxu0 0.0
    %215 = vmatprep.subr.mxu0 0.0
    %216 = vmatpush2.msra.mxu0 0.0
    %217 = vmatprep.subr.mxu0 0.0
    %218 = vmatpush2.msra.mxu0 0.0
    %219 = vmatprep.subr.mxu0 0.0
    %220 = vmatpush2.msra.mxu0 0.0
    %221 = vmatprep.subr.mxu0 0.0
    %222 = vmatpush2.msra.mxu0 0.0
    %223 = vmatprep.subr.mxu0 0.0
    %224 = vmatpush2.msra.mxu0 0.0
    %225 = vmatprep.subr.mxu0 0.0
    %226 = vmatpush2.msra.mxu0 0.0
    %227 = vmatprep.subr.mxu0 0.0
    %228 = vmatpush2.msra.mxu0 0.0
    %229 = vmatprep.subr.mxu0 0.0
    %230 = vmatpush2.msra.mxu0 0.0
    %231 = vmatprep.subr.mxu0 0.0
    %232 = vmatpush2.msra.mxu0 0.0
    %233 = vmatprep.mubr.f32.mxu0 0.0
    %234 = vmatmul.mubr.f32.gmra.mxu0 %v164
    %v235 = vpop.f32.mrf.mxu0
    %v236 = vadd.f32 %v168, %v235
    %v237 = vpop.f32.mrf.mxu0
    %238 = vdwg.mxu0
    %v239 = vmax.f32 %v236, 0.0
    %v240 = vlaneseq
    %v241 = vshrl.u32 %v240, 7
    %v242 = vsub.s32 2, %v241
    %v243 = vrot.slane %v85, %v242
    %244 = vmatprep.subr.mxu0 0.0
    %245 = vmatpush1.msra.mxu0 %v84
    %246 = vmatprep.subr.mxu0 0.0
    %247 = vmatpush1.msra.mxu0 %v83
    %248 = vmatprep.subr.mxu0 0.0
    %249 = vmatpush1.msra.mxu0 %v82
    %250 = vmatprep.subr.mxu0 0.0
    %251 = vmatpush1.msra.mxu0 %v81
    %252 = vmatprep.subr.mxu0 0.0
    %253 = vmatpush1.msra.mxu0 %v80
    %254 = vmatprep.subr.mxu0 0.0
    %255 = vmatpush1.msra.mxu0 %v79
    %256 = vmatprep.subr.mxu0 0.0
    %257 = vmatpush1.msra.mxu0 %v78
    %258 = vmatprep.subr.mxu0 0.0
    %259 = vmatpush1.msra.mxu0 %v77
    %260 = vmatprep.subr.mxu0 0.0
    %261 = vmatpush1.msra.mxu0 %v76
    %262 = vmatprep.subr.mxu0 0.0
    %263 = vmatpush1.msra.mxu0 %v75
    %264 = vmatprep.subr.mxu0 0.0
    %265 = vmatpush1.msra.mxu0 %v74
    %266 = vmatprep.subr.mxu0 0.0
    %267 = vmatpush1.msra.mxu0 %v73
    %268 = vmatprep.subr.mxu0 0.0
    %269 = vmatpush1.msra.mxu0 %v72
    %270 = vmatprep.subr.mxu0 0.0
    %271 = vmatpush1.msra.mxu0 %v71
    %272 = vmatprep.subr.mxu0 0.0
    %273 = vmatpush1.msra.mxu0 %v70
    %274 = vmatprep.subr.mxu0 0.0
    %275 = vmatpush1.msra.mxu0 %v69
    %276 = vmatprep.subr.mxu0 0.0
    %277 = vmatpush2.msra.mxu0 0.0
    %278 = vmatprep.subr.mxu0 0.0
    %279 = vmatpush2.msra.mxu0 0.0
    %280 = vmatprep.subr.mxu0 0.0
    %281 = vmatpush2.msra.mxu0 0.0
    %282 = vmatprep.subr.mxu0 0.0
    %283 = vmatpush2.msra.mxu0 0.0
    %284 = vmatprep.subr.mxu0 0.0
    %285 = vmatpush2.msra.mxu0 0.0
    %286 = vmatprep.subr.mxu0 0.0
    %287 = vmatpush2.msra.mxu0 0.0
    %288 = vmatprep.subr.mxu0 0.0
    %289 = vmatpush2.msra.mxu0 0.0
    %290 = vmatprep.subr.mxu0 0.0
    %291 = vmatpush2.msra.mxu0 0.0
    %292 = vmatprep.subr.mxu0 0.0
    %293 = vmatpush2.msra.mxu0 0.0
    %294 = vmatprep.subr.mxu0 0.0
    %295 = vmatpush2.msra.mxu0 0.0
    %296 = vmatprep.subr.mxu0 0.0
    %297 = vmatpush2.msra.mxu0 0.0
    %298 = vmatprep.subr.mxu0 0.0
    %299 = vmatpush2.msra.mxu0 0.0
    %300 = vmatprep.subr.mxu0 0.0
    %301 = vmatpush2.msra.mxu0 0.0
    %302 = vmatprep.subr.mxu0 0.0
    %303 = vmatpush2.msra.mxu0 0.0
    %304 = vmatprep.subr.mxu0 0.0
    %305 = vmatpush2.msra.mxu0 0.0
    %306 = vmatprep.subr.mxu0 0.0
    %307 = vmatpush2.msra.mxu0 0.0
    %308 = vmatprep.mubr.f32.mxu0 0.0
    %309 = vmatmul.mubr.f32.gmra.mxu0 %v239
    %v310 = vpop.f32.mrf.mxu0
    %v311 = vadd.f32 %v243, %v310
    %v312 = vpop.f32.mrf.mxu0
    %313 = vdwg.mxu0
    %vm314 = vcmask 31744
    %315 = vst.msk [vmem:[%s3] sm:$0xff] %vm314, %v311
    // Predicated region
    $region26: #{qnetwork_forward.1} parent=1 // pred_check
      _
    $region27: #{qnetwork_forward.1} parent=1 // pred_check_branch
      %317 = sbr.rel (0) target = $region29
    $region28: #{qnetwork_forward.1} parent=1 // pred_region
      _
    $region29: #{qnetwork_forward.1} parent=1 // pred_fallthru
      _
    // Predicated region
    $region30: #{qnetwork_forward.1} parent=1 // pred_check
      _
    $region31: #{qnetwork_forward.1} parent=1 // pred_check_branch
      %319 = sbr.rel (0) target = $region33
    $region32: #{qnetwork_forward.1} parent=1 // pred_region
      _
    $region33: #{qnetwork_forward.1} parent=1 // pred_fallthru
      _
    %320 = vsyncpa [#allocation3], 1
    %321 = vsyncpa [#allocation5], 1

</llo_original>
